<compile_context>
chip_gen: v5e
topology: v5e:2x2
jax: 0.10.0
libtpu: 0.0.40
codegen_flags: <defaults>
</compile_context>

<pallas_src>
import functools

import jax
import jax.numpy as jnp
from jax.experimental import pallas as pl
from jax.experimental.pallas import tpu as pltpu


def _round_up(x, m):
    return ((x + m - 1) // m) * m


def _conv_relu_kernel(p_ref, w_ref, b_ref, y_ref, *, negative_slope):
    # p_ref: (TM, CK) im2col patches; w_ref: (CK, Np) pre-transposed weight;
    # b_ref: (1, Np) bias; y_ref: (TM, Np) conv + LeakyReLU output.
    acc = jnp.dot(p_ref[...], w_ref[...], preferred_element_type=jnp.float32)
    z = acc + b_ref[...]                       # VPU add, broadcast over rows
    y_ref[...] = jnp.where(z >= 0.0, z, negative_slope * z).astype(y_ref.dtype)


def _scale_shift_kernel(y_ref, a_ref, c_ref, o_ref):
    # Fused BatchNorm normalize + affine: o = y * a + c (per-channel a, c).
    o_ref[...] = (y_ref[...] * a_ref[...] + c_ref[...]).astype(o_ref.dtype)


def conv_block_forward(x, conv_w, conv_b, bn_gamma, bn_beta, *,
                       stride=1, negative_slope=0.01, eps=1e-5):
    """Conv1d (valid padding) -> LeakyReLU -> BatchNorm1d with batch stats."""
    B, C_in, L = x.shape
    C_out, C_in_w, K = conv_w.shape
    assert C_in_w == C_in
    L_out = (L - K) // stride + 1
    assert L_out >= 1

    # ---- wrapper-side im2col (layout plumbing only, no compute) ----
    cols = [x[:, :, k: k + stride * L_out: stride] for k in range(K)]  # (B,C_in,L_out)
    patches = jnp.stack(cols, axis=-1)            # (B, C_in, L_out, K)
    patches = patches.transpose(0, 2, 1, 3)       # (B, L_out, C_in, K)
    M = B * L_out
    CK = C_in * K
    patches = patches.reshape(M, CK)

    # Lane-dense channel dim and row tiling.
    Np = _round_up(max(C_out, 128), 128)
    TM = min(256, _round_up(M, 8))
    M_pad = _round_up(M, TM)
    grid = (M_pad // TM,)

    patches = jnp.pad(patches, ((0, M_pad - M), (0, 0)))
    w_t = jnp.pad(conv_w.reshape(C_out, CK).T, ((0, 0), (0, Np - C_out)))  # (CK, Np)
    b_p = jnp.pad(conv_b, (0, Np - C_out)).reshape(1, Np)

    # ---- kernel 1: conv-as-matmul + bias + LeakyReLU ----
    y_pad = pl.pallas_call(
        functools.partial(_conv_relu_kernel, negative_slope=negative_slope),
        out_shape=jax.ShapeDtypeStruct((M_pad, Np), jnp.float32),
        grid=grid,
        in_specs=[
            pl.BlockSpec((TM, CK), lambda i: (i, 0)),   # row tile of patches
            pl.BlockSpec((CK, Np), lambda i: (0, 0)),   # weight stays resident
            pl.BlockSpec((1, Np), lambda i: (0, 0)),    # bias stays resident
        ],
        out_specs=pl.BlockSpec((TM, Np), lambda i: (i, 0)),
        compiler_params=pltpu.CompilerParams(
            dimension_semantics=("parallel",)),
    )(patches, w_t, b_p)

    # ---- BatchNorm1d batch statistics (per channel, over batch*length) ----
    # TODO(synk): the global cross-tile reduction for the batch statistics is
    # done in XLA between the two Pallas calls (it does not fit a single
    # parallel grid); the normalize+affine itself is a Pallas kernel.
    y_valid = y_pad[:M, :C_out]
    mean = jnp.mean(y_valid, axis=0)
    var = jnp.var(y_valid, axis=0)                # biased var, as PyTorch training BN
    inv_std = jax.lax.rsqrt(var + eps)
    a = bn_gamma * inv_std
    c = bn_beta - mean * a
    a_p = jnp.pad(a, (0, Np - C_out)).reshape(1, Np)
    c_p = jnp.pad(c, (0, Np - C_out)).reshape(1, Np)

    # ---- kernel 2: fused BN normalize + affine ----
    out_pad = pl.pallas_call(
        _scale_shift_kernel,
        out_shape=jax.ShapeDtypeStruct((M_pad, Np), jnp.float32),
        grid=grid,
        in_specs=[
            pl.BlockSpec((TM, Np), lambda i: (i, 0)),
            pl.BlockSpec((1, Np), lambda i: (0, 0)),
            pl.BlockSpec((1, Np), lambda i: (0, 0)),
        ],
        out_specs=pl.BlockSpec((TM, Np), lambda i: (i, 0)),
        compiler_params=pltpu.CompilerParams(
            dimension_semantics=("parallel",)),
    )(y_pad, a_p, c_p)

    return out_pad[:M, :C_out].reshape(B, L_out, C_out).transpose(0, 2, 1)


if __name__ == "__main__":
    key = jax.random.PRNGKey(0)
    k_x, k_w, k_b, k_g, k_be = jax.random.split(key, 5)

    B, C_in, L = 2, 4, 16
    C_out, K, stride = 8, 3, 1

    bound = 1.0 / jnp.sqrt(jnp.float32(C_in * K))
    conv_w = jax.random.uniform(k_w, (C_out, C_in, K), jnp.float32, -bound, bound)
    conv_b = jax.random.uniform(k_b, (C_out,), jnp.float32, -bound, bound)
    bn_gamma = jax.random.uniform(k_g, (C_out,), jnp.float32, 0.5, 1.5)
    bn_beta = jax.random.uniform(k_be, (C_out,), jnp.float32, -0.5, 0.5)

    x = jax.random.normal(k_x, (B, C_in, L), jnp.float32)

    out = conv_block_forward(x, conv_w, conv_b, bn_gamma, bn_beta, stride=stride)
    out = jax.block_until_ready(out)

    # ---- pure-JAX reference (independent of the kernel's im2col path) ----
    L_out = (L - K) // stride + 1
    ref_conv = jnp.stack(
        [jnp.tensordot(x[:, :, l * stride: l * stride + K], conv_w,
                       axes=[[1, 2], [1, 2]]) for l in range(L_out)],
        axis=-1) + conv_b[None, :, None]                       # (B, C_out, L_out)
    ref_relu = jnp.where(ref_conv >= 0.0, ref_conv, 0.01 * ref_conv)
    mu = ref_relu.mean(axis=(0, 2), keepdims=True)
    va = ref_relu.var(axis=(0, 2), keepdims=True)              # biased var
    ref = (ref_relu - mu) * jax.lax.rsqrt(va + 1e-5) * bn_gamma[None, :, None] \
        + bn_beta[None, :, None]

    assert out.shape == (B, C_out, L_out)
    assert jnp.allclose(out, ref, atol=1e-4, rtol=1e-4), \
        float(jnp.max(jnp.abs(out - ref)))

    print("KERNEL_OK")
</pallas_src>

<mosaic_0001>
module attributes {stable_mosaic.version = 11 : i64} {
  func.func @_conv_relu_kernel(%arg0: i32, %arg1: memref<32x12xf32, #tpu.memory_space<vmem>>, %arg2: memref<12x128xf32, #tpu.memory_space<vmem>>, %arg3: memref<1x128xf32, #tpu.memory_space<vmem>>, %arg4: memref<32x128xf32, #tpu.memory_space<vmem>>) attributes {dimension_semantics = [#tpu.dimension_semantics<parallel>], iteration_bounds = array<i64: 1>, scalar_prefetch = 0 : i64, scratch_operands = 0 : i64, tpu.core_type = #tpu.core_type<tc>, window_params = [{transform_indices = @transform_0, window_bounds = array<i64: 32, 12>}, {pipeline_mode = #tpu.pipeline_mode<synchronous>, transform_indices = @transform_1, window_bounds = array<i64: 12, 128>}, {pipeline_mode = #tpu.pipeline_mode<synchronous>, transform_indices = @transform_2, window_bounds = array<i64: 1, 128>}, {transform_indices = @transform_3, window_bounds = array<i64: 32, 128>}]} {
    %c0 = arith.constant 0 : index
    %c0_0 = arith.constant 0 : index
    %0 = vector.load %arg1[%c0, %c0_0] : memref<32x12xf32, #tpu.memory_space<vmem>>, vector<32x12xf32>
    %c0_1 = arith.constant 0 : index
    %c0_2 = arith.constant 0 : index
    %1 = vector.load %arg2[%c0_1, %c0_2] : memref<12x128xf32, #tpu.memory_space<vmem>>, vector<12x128xf32>
    %cst = arith.constant dense<0.000000e+00> : vector<32x128xf32>
    %2 = tpu.matmul %0, %1, %cst {dimension_numbers = #tpu.dot_dimension_numbers<[1], [0], [0], [1], [0, 0, 1, 1], [], []>} : vector<32x12xf32>, vector<12x128xf32>, vector<32x128xf32> -> vector<32x128xf32>
    %c0_3 = arith.constant 0 : index
    %c0_4 = arith.constant 0 : index
    %3 = vector.load %arg3[%c0_3, %c0_4] : memref<1x128xf32, #tpu.memory_space<vmem>>, vector<1x128xf32>
    %4 = vector.broadcast %3 : vector<1x128xf32> to vector<32x128xf32>
    %5 = arith.addf %2, %4 : vector<32x128xf32>
    %cst_5 = arith.constant 0.000000e+00 : f32
    %6 = vector.broadcast %cst_5 : f32 to vector<32x128xf32>
    %7 = arith.cmpf oge, %5, %6 : vector<32x128xf32>
    %cst_6 = arith.constant 0.00999999977 : f32
    %8 = vector.broadcast %cst_6 : f32 to vector<32x128xf32>
    %9 = arith.mulf %8, %5 : vector<32x128xf32>
    %10 = arith.select %7, %5, %9 : vector<32x128xi1>, vector<32x128xf32>
    %c0_7 = arith.constant 0 : index
    %c0_8 = arith.constant 0 : index
    %11 = vector.load %arg4[%c0_7, %c0_8] : memref<32x128xf32, #tpu.memory_space<vmem>>, vector<32x128xf32>
    tpu.vector_store %arg4[%c0_7, %c0_8], %10 {strides = array<i32>} : memref<32x128xf32, #tpu.memory_space<vmem>>, vector<32x128xf32>,
    return
  }
  func.func @transform_0(%arg0: i32) -> (i32, i32) {
    %c0_i32 = arith.constant 0 : i32
    %c0_i32_0 = arith.constant 0 : i32
    return %arg0, %c0_i32 : i32, i32
  }
  func.func @transform_1(%arg0: i32) -> (i32, i32) {
    %c0_i32 = arith.constant 0 : i32
    %c0_i32_0 = arith.constant 0 : i32
    %c0_i32_1 = arith.constant 0 : i32
    return %c0_i32, %c0_i32_0 : i32, i32
  }
  func.func @transform_2(%arg0: i32) -> (i32, i32) {
    %c0_i32 = arith.constant 0 : i32
    %c0_i32_0 = arith.constant 0 : i32
    %c0_i32_1 = arith.constant 0 : i32
    return %c0_i32, %c0_i32_0 : i32, i32
  }
  func.func @transform_3(%arg0: i32) -> (i32, i32) {
    %c0_i32 = arith.constant 0 : i32
    %c0_i32_0 = arith.constant 0 : i32
    return %arg0, %c0_i32 : i32, i32
  }
}

</mosaic_0001>

<llo_original>
// kernel: tpu_custom_call.1
$region0: #{tpu_custom_call.1}
  #allocation0 [shape = 'u32[]', space=smem, size = 0x4, offset = 0x4, fixed_abs, tag = 'smem constant byte address 0x4 - core index']
  #allocation1 [shape = 'u32[72,128]{1,0:T(1,128)}', space=vmem, size = 0x9000, scoped, tag = 'internal scratch']
  %s0 = inlined_call_operand.vmem [shape: f32[32,12], index: 0, kind: input, shape index: {}]
  %s1 = inlined_call_operand.vmem [shape: f32[12,128], index: 1, kind: input, shape index: {}]
  %s2 = inlined_call_operand.vmem [shape: f32[1,128], index: 2, kind: input, shape index: {}]
  %s3 = inlined_call_operand.hbm [shape: f32[32,128], index: 3, kind: output, shape index: {}]
  %s4 = sld [smem:[#allocation0]]
  $region22: #{tpu_custom_call.1} parent=0
    _
  %s6 = ssub.s32 1, %s4
  %s7 = scalar_select 0, %s6, %s4
  $region1: #{tpu_custom_call.1} parent=0
    #allocation2 [shape = 'u8[16384]{0}', space=vmem, size = 0x4000, scoped, tag = 'output window, operand 0, single buffered']
    #allocation3 [shape = 's32[1]{0}', space=sflag, size = 0x4, scoped, tag = 'scoped memory for tpu_custom_call.1']
    %8 = vsyncpa [#allocation3], 0
    // Predicated region
    $region2: #{tpu_custom_call.1} parent=1 // pred_check
      _
    $region3: #{tpu_custom_call.1} parent=1 // pred_check_branch
      %10 = sbr.rel (0) target = $region5
    $region4: #{tpu_custom_call.1} parent=1 // pred_region
      _
    $region5: #{tpu_custom_call.1} parent=1 // pred_fallthru
      _
    // Predicated region
    $region6: #{tpu_custom_call.1} parent=1 // pred_check
      _
    $region7: #{tpu_custom_call.1} parent=1 // pred_check_branch
      %12 = sbr.rel (0) target = $region9
    $region8: #{tpu_custom_call.1} parent=1 // pred_region
      _
    $region9: #{tpu_custom_call.1} parent=1 // pred_fallthru
      _
    // Predicated region
    $region10: #{tpu_custom_call.1} parent=1 // pred_check
      _
    $region11: #{tpu_custom_call.1} parent=1 // pred_check_branch
      %14 = sbr.rel (0) target = $region13
    $region12: #{tpu_custom_call.1} parent=1 // pred_region
      _
    $region13: #{tpu_custom_call.1} parent=1 // pred_fallthru
      _
    %v15 = vld [vmem:[%s0] sm:$0xff]
    %v16 = vld [vmem:[%s0 + $0x8] sm:$0xff]
    %v17 = vld [vmem:[%s0 + $0x10] sm:$0xff]
    %v18 = vld [vmem:[%s0 + $0x18] sm:$0xff]
    %v19 = vld [vmem:[%s1] sm:$0xff]
    %v20 = vld [vmem:[%s1 + $0x8] sm:$0xf]
    %v21 = vld [vmem:[%s2] sm:$0x1]
    %v23 = vperm.slane %v21, 0
    %vm25 = vcmask 97280
    %v27 = vsel %vm25, %v15, 0
    %v30 = vsel %vm25, %v16, 0
    %v33 = vsel %vm25, %v17, 0
    %v36 = vsel %vm25, %v18, 0
    %vm38 = vcmask 1043456
    %v40 = vsel %vm38, %v20, 0
    %42 = vmatpush.msra.mxu0 0.0
    %43 = vmatpush.msra.mxu0 0.0
    %44 = vmatpush.msra.mxu0 0.0
    %45 = vmatpush.msra.mxu0 0.0
    %46 = vmatpush.msra.mxu0 0.0
    %47 = vmatpush.msra.mxu0 0.0
    %48 = vmatpush.msra.mxu0 0.0
    %49 = vmatpush.msra.mxu0 0.0
    %50 = vmatpush.msra.mxu0 0.0
    %51 = vmatpush.msra.mxu0 0.0
    %52 = vmatpush.msra.mxu0 0.0
    %53 = vmatpush.msra.mxu0 0.0
    %54 = vmatpush.msra.mxu0 0.0
    %55 = vmatpush.msra.mxu0 0.0
    %56 = vmatpush.msra.mxu0 %v40
    %57 = vmatpush.msra.mxu0 %v19
    %58 = vmatmul.f32.gmra.mxu0 %v27
    %v59 = vpop.f32.mrf.mxu0
    %v60 = vadd.f32 %v23, %v59
    %61 = vmatmul.f32.gmra.mxu0 %v30
    %v62 = vpop.f32.mrf.mxu0
    %v63 = vadd.f32 %v23, %v62
    %64 = vmatmul.f32.gmra.mxu0 %v33
    %v65 = vpop.f32.mrf.mxu0
    %v66 = vadd.f32 %v23, %v65
    %67 = vmatmul.f32.gmra.mxu0 %v36
    %v68 = vpop.f32.mrf.mxu0
    %v69 = vadd.f32 %v23, %v68
    %70 = vdwg.mxu0
    %vm71 = vcmp.ge.f32.partialorder %v60, 0.0
    %vm72 = vcmp.ge.f32.partialorder %v63, 0.0
    %vm73 = vcmp.ge.f32.partialorder %v66, 0.0
    %vm74 = vcmp.ge.f32.partialorder %v69, 0.0
    %v75 = vmul.f32 %v60, 0.01
    %v76 = vmul.f32 %v63, 0.01
    %v77 = vmul.f32 %v66, 0.01
    %v78 = vmul.f32 %v69, 0.01
    %v79 = vsel %vm71, %v60, %v75
    %v80 = vsel %vm72, %v63, %v76
    %v81 = vsel %vm73, %v66, %v77
    %v82 = vsel %vm74, %v69, %v78
    %83 = vst [vmem:[#allocation2] sm:$0xff] %v79
    %84 = vst [vmem:[#allocation2 + $0x8] sm:$0xff] %v80
    %85 = vst [vmem:[#allocation2 + $0x10] sm:$0xff] %v81
    %86 = vst [vmem:[#allocation2 + $0x18] sm:$0xff] %v82
    // Predicated region
    $region14: #{tpu_custom_call.1} parent=1 // pred_check
      _
    $region15: #{tpu_custom_call.1} parent=1 // pred_check_branch
      %88 = sbr.rel (0) target = $region17
    $region16: #{tpu_custom_call.1} parent=1 // pred_region
      %90 = vsyncadd [#allocation3], 0
      %s91 = sshll.u32 [#allocation2], 4
      %s92 = int_to_ptr.vmem [resolvable:$true] %s91
      %s93 = sshll.u32 %s3, 4
      %s94 = int_to_ptr.hbm [resolvable:$true] %s93
      %99 = dma.vmem_to_hbm [thread:$0]  %s92, 512, %s94, [#allocation3], 128, 128, 8
    $region17: #{tpu_custom_call.1} parent=1 // pred_fallthru
      _
    // Predicated region
    $region18: #{tpu_custom_call.1} parent=1 // pred_check
      _
    $region19: #{tpu_custom_call.1} parent=1 // pred_check_branch
      %101 = sbr.rel (0) target = $region21
    $region20: #{tpu_custom_call.1} parent=1 // pred_region
      %103 = dma.done [#allocation3], 512
    $region21: #{tpu_custom_call.1} parent=1 // pred_fallthru
      _
    %104 = vsyncpa [#allocation3], 1

</llo_original>
